<compile_context>
chip_gen: v7x
topology: tpu7x:2x2x1
jax: 0.10.0
libtpu: 0.0.40
codegen_flags: <defaults>
</compile_context>

<pallas_src>
import functools

import jax
import jax.numpy as jnp
from jax import lax
from jax.experimental import pallas as pl
from jax.experimental.pallas import tpu as pltpu


def siamese_kernel(z1_ref, z2_ref, w1_ref, b1_ref, w23t_ref, b23_ref, out_ref):
    """One batch tile: out[0, :] = fc3(fc2(|relu(fc1 z1) - relu(fc1 z2)|))."""
    w1 = w1_ref[...]                                   # (D, 64)  compute dtype
    b1 = b1_ref[...]                                   # (1, 64)  f32

    # Cast the streamed inputs to the MXU dtype *inside* the kernel: the VPU
    # cast rides in idle bundle slots, and it avoids a wrapper-side astype
    # that would cost a full extra HBM read+write pass.
    h1 = jnp.dot(z1_ref[...].astype(w1.dtype), w1,
                 preferred_element_type=jnp.float32)   # (tb, 64) f32
    h2 = jnp.dot(z2_ref[...].astype(w1.dtype), w1,
                 preferred_element_type=jnp.float32)
    h1 = jnp.maximum(h1 + b1, 0.0)                     # f32 bias + relu
    h2 = jnp.maximum(h2 + b1, 0.0)
    diff = jnp.abs(h1 - h2)                            # (tb, 64) f32

    # Folded fc2∘fc3 as one projection, emitted lane-major:
    #   row[0, t] = sum_k w23t[0, k] * diff[t, k]
    # so the output block is a dense (1, tb) row (unmasked vector stores).
    row = lax.dot_general(
        w23t_ref[...], diff,
        dimension_numbers=(((1,), (1,)), ((), ())),
        preferred_element_type=jnp.float32)            # (1, tb)
    out_ref[...] = row + b23_ref[...]                  # + folded bias (1, 1)


def _choose_tiling(batch, tile_b):
    """Pick (tb, grid_b, b_pad).

    Constraints:
      * grid_b == 1 -> tb == batch (blocks equal the full arrays, any batch).
      * grid_b  > 1 -> tb must be a multiple of 128 (sublane-aligned input
        blocks, lane-dense (1, tb) output blocks).
    Prefers a tb that divides batch exactly so the wrapper never pays a
    jnp.pad pass over the (memory-bound) inputs.
    """
    tile_b = max(128, (tile_b // 128) * 128)
    if batch > tile_b:
        # Largest multiple of 128 <= tile_b that divides batch (no padding).
        for tb in range(tile_b, 127, -128):
            if batch % tb == 0:
                return tb, batch // tb, batch
        # Rare fallback: pad (costs one extra HBM pass over the tail arrays).
        tb = tile_b
        grid_b = -(-batch // tb)
        return tb, grid_b, grid_b * tb
    # Batch fits one tile.  On v7x, >=2 grid steps lets the "parallel" batch
    # axis shard across both TensorCores, so split when alignment allows.
    if batch >= 256 and batch % 256 == 0:
        return batch // 2, 2, batch
    return batch, 1, batch


@functools.partial(jax.jit,
                   static_argnames=("tile_b", "compute_dtype", "z_buffers"))
def siamese_forward(z1, z2, params, *, tile_b=4096,
                    compute_dtype=jnp.bfloat16, z_buffers=2):
    w1, b1, w2, b2, w3, b3 = params

    # Exact fold of fc2 and fc3 (no activation between them in the module),
    # stored transposed so the kernel can emit a lane-dense (1, tb) row.
    w23t = jnp.transpose(w2 @ w3).astype(jnp.float32)      # (1, 64)
    b23 = (b2 @ w3 + b3).astype(jnp.float32)               # (1, 1)
    b1f = b1.astype(jnp.float32)                           # (1, 64)
    w1c = w1.astype(compute_dtype)                         # (D, 64), tiny cast

    B, D = z1.shape
    tb, grid_b, b_pad = _choose_tiling(B, tile_b)
    if b_pad != B:
        # Fallback only (ragged batch bigger than the tile and with no
        # 128-multiple divisor) -- costs one extra pass over the inputs.
        z1 = jnp.pad(z1, ((0, b_pad - B), (0, 0)))
        z2 = jnp.pad(z2, ((0, b_pad - B), (0, 0)))

    z_index = lambda i: (i, 0)
    if z_buffers == 2:
        z_spec = pl.BlockSpec((tb, D), z_index)
    else:
        # Sweepable on v7x if the profile still shows exposed DMA.
        z_spec = pl.BlockSpec((tb, D), z_index,
                              pipeline_mode=pl.Buffered(z_buffers))
    resident = lambda a: pl.BlockSpec(a.shape, lambda i: (0, 0))

    z_item = jnp.dtype(z1.dtype).itemsize
    # Advisory: memory-bound streamer (2 fc1 GEMMs dominate the flops).
    cost = pl.CostEstimate(
        flops=int(4 * b_pad * D * 64 + 2 * b_pad * 64 + 5 * b_pad * 64),
        transcendentals=0,
        bytes_accessed=int(2 * b_pad * D * z_item + 4 * b_pad
                           + 4 * (D * 64 + 64 + 64 + 1)))
    # Explicit VMEM headroom: 2 inputs x z_buffers x (tb, D) tiles + outputs.
    vmem_need = (2 * z_buffers * tb * D * z_item + 2 * 2 * tb * 4 + (1 << 20))
    vmem_limit = int(min(max(vmem_need, 32 << 20), 48 << 20))

    out = pl.pallas_call(
        siamese_kernel,
        out_shape=jax.ShapeDtypeStruct((1, b_pad), jnp.float32),
        grid=(grid_b,),
        in_specs=[
            z_spec,              # z1  streamed tile (native dtype)
            z_spec,              # z2  streamed tile (native dtype)
            resident(w1c),       # w1   (D, 64)  VMEM-resident
            resident(b1f),       # b1   (1, 64)  VMEM-resident
            resident(w23t),      # w23t (1, 64)  VMEM-resident (fc2.fc3 fold)
            resident(b23),       # b23  (1, 1)   VMEM-resident
        ],
        out_specs=pl.BlockSpec((1, tb), lambda i: (0, i)),   # lane-dense row
        compiler_params=pltpu.CompilerParams(
            dimension_semantics=("parallel",),
            vmem_limit_bytes=vmem_limit),
        cost_estimate=cost,
    )(z1, z2, w1c, b1f, w23t, b23)

    # torch's .squeeze(1): -> (B,); drop any batch padding.
    return out[0, :B]


def init_params(key, latent_dim=128):
    """Deterministic synthetic params matching the nn.Linear shapes.

    Stored as (in_features, out_features) with (1, out) biases; real PyTorch
    nn.Linear weights are (out, in) / 1-D biases and must be transposed /
    reshaped when porting a checkpoint.
    """
    ks = jax.random.split(key, 6)
    w1 = jax.random.normal(ks[0], (latent_dim, 64), jnp.float32) * 0.05
    b1 = jax.random.normal(ks[1], (1, 64), jnp.float32) * 0.05
    w2 = jax.random.normal(ks[2], (64, 32), jnp.float32) * 0.05
    b2 = jax.random.normal(ks[3], (1, 32), jnp.float32) * 0.05
    w3 = jax.random.normal(ks[4], (32, 1), jnp.float32) * 0.05
    b3 = jax.random.normal(ks[5], (1, 1), jnp.float32) * 0.05
    return (w1, b1, w2, b2, w3, b3)


def reference_forward(z1, z2, params):
    """Pure-JAX f32 reference of the PyTorch forward (unfused)."""
    w1, b1, w2, b2, w3, b3 = params
    h1 = jnp.maximum(z1 @ w1 + b1, 0.0)
    h2 = jnp.maximum(z2 @ w1 + b1, 0.0)
    diff = jnp.abs(h1 - h2)
    return ((diff @ w2 + b2) @ w3 + b3)[:, 0]


if __name__ == "__main__":
    latent_dim = 128
    key = jax.random.PRNGKey(0)
    k_z1, k_z2, k_p = jax.random.split(key, 3)
    params = init_params(k_p, latent_dim)

    # --- small single-tile path (grid_b = 1, blocks equal full arrays) ------
    batch = 8
    z1 = jax.random.normal(k_z1, (batch, latent_dim), jnp.float32)
    z2 = jax.random.normal(k_z2, (batch, latent_dim), jnp.float32)
    ref = reference_forward(z1, z2, params)

    # f32 compute path: verifies module semantics (fc2/fc3 fold is exact).
    out_f32 = jax.block_until_ready(
        siamese_forward(z1, z2, params, compute_dtype=jnp.float32))
    assert out_f32.shape == (batch,), out_f32.shape
    assert jnp.allclose(out_f32, ref, atol=5e-3, rtol=1e-3), (out_f32, ref)

    # Default bf16 streaming path (f32 inputs cast to bf16 inside the kernel).
    out_bf16 = jax.block_until_ready(siamese_forward(z1, z2, params))
    assert out_bf16.shape == (batch,), out_bf16.shape
    assert jnp.allclose(out_bf16, ref, atol=1e-2, rtol=5e-2), (out_bf16, ref)

    # --- multi-step tiled path (tb=128, grid_b=2: exercises the grid, the ---
    # --- lane-dense output blocks, resident weights, "parallel" batch axis) -
    batch2 = 256
    z1b = jax.random.normal(jax.random.PRNGKey(1), (batch2, latent_dim),
                            jnp.float32)
    z2b = jax.random.normal(jax.random.PRNGKey(2), (batch2, latent_dim),
                            jnp.float32)
    out2 = jax.block_until_ready(
        siamese_forward(z1b, z2b, params, tile_b=128))
    ref2 = reference_forward(z1b, z2b, params)
    assert out2.shape == (batch2,), out2.shape
    assert jnp.allclose(out2, ref2, atol=1e-2, rtol=5e-2), (out2, ref2)

    print("KERNEL_OK")
</pallas_src>

<mosaic_0001>
module attributes {stable_mosaic.version = 11 : i64} {
  func.func @siamese_kernel(%arg0: i32, %arg1: memref<8x128xf32, #tpu.memory_space<vmem>>, %arg2: memref<8x128xf32, #tpu.memory_space<vmem>>, %arg3: memref<128x64xf32, #tpu.memory_space<vmem>>, %arg4: memref<1x64xf32, #tpu.memory_space<vmem>>, %arg5: memref<1x64xf32, #tpu.memory_space<vmem>>, %arg6: memref<1x1xf32, #tpu.memory_space<vmem>>, %arg7: memref<1x8xf32, #tpu.memory_space<vmem>>) attributes {dimension_semantics = [#tpu.dimension_semantics<parallel>], iteration_bounds = array<i64: 1>, scalar_prefetch = 0 : i64, scratch_operands = 0 : i64, tpu.core_type = #tpu.core_type<tc>, window_params = [{transform_indices = @transform_0, window_bounds = array<i64: 8, 128>}, {transform_indices = @transform_1, window_bounds = array<i64: 8, 128>}, {pipeline_mode = #tpu.pipeline_mode<synchronous>, transform_indices = @transform_2, window_bounds = array<i64: 128, 64>}, {pipeline_mode = #tpu.pipeline_mode<synchronous>, transform_indices = @transform_3, window_bounds = array<i64: 1, 64>}, {pipeline_mode = #tpu.pipeline_mode<synchronous>, transform_indices = @transform_4, window_bounds = array<i64: 1, 64>}, {pipeline_mode = #tpu.pipeline_mode<synchronous>, transform_indices = @transform_5, window_bounds = array<i64: 1, 1>}, {transform_indices = @transform_6, window_bounds = array<i64: 1, 8>}]} {
    %c0 = arith.constant 0 : index
    %c0_0 = arith.constant 0 : index
    %0 = vector.load %arg3[%c0, %c0_0] : memref<128x64xf32, #tpu.memory_space<vmem>>, vector<128x64xf32>
    %c0_1 = arith.constant 0 : index
    %c0_2 = arith.constant 0 : index
    %1 = vector.load %arg4[%c0_1, %c0_2] : memref<1x64xf32, #tpu.memory_space<vmem>>, vector<1x64xf32>
    %c0_3 = arith.constant 0 : index
    %c0_4 = arith.constant 0 : index
    %2 = vector.load %arg1[%c0_3, %c0_4] : memref<8x128xf32, #tpu.memory_space<vmem>>, vector<8x128xf32>
    %cst = arith.constant dense<0.000000e+00> : vector<8x64xf32>
    %3 = tpu.matmul %2, %0, %cst {dimension_numbers = #tpu.dot_dimension_numbers<[1], [0], [0], [1], [0, 0, 1, 1], [], []>} : vector<8x128xf32>, vector<128x64xf32>, vector<8x64xf32> -> vector<8x64xf32>
    %c0_5 = arith.constant 0 : index
    %c0_6 = arith.constant 0 : index
    %4 = vector.load %arg2[%c0_5, %c0_6] : memref<8x128xf32, #tpu.memory_space<vmem>>, vector<8x128xf32>
    %cst_7 = arith.constant dense<0.000000e+00> : vector<8x64xf32>
    %5 = tpu.matmul %4, %0, %cst_7 {dimension_numbers = #tpu.dot_dimension_numbers<[1], [0], [0], [1], [0, 0, 1, 1], [], []>} : vector<8x128xf32>, vector<128x64xf32>, vector<8x64xf32> -> vector<8x64xf32>
    %6 = vector.broadcast %1 : vector<1x64xf32> to vector<8x64xf32>
    %7 = arith.addf %3, %6 : vector<8x64xf32>
    %cst_8 = arith.constant 0.000000e+00 : f32
    %8 = vector.broadcast %cst_8 : f32 to vector<8x64xf32>
    %9 = arith.maximumf %7, %8 : vector<8x64xf32>
    %10 = vector.broadcast %1 : vector<1x64xf32> to vector<8x64xf32>
    %11 = arith.addf %5, %10 : vector<8x64xf32>
    %cst_9 = arith.constant 0.000000e+00 : f32
    %12 = vector.broadcast %cst_9 : f32 to vector<8x64xf32>
    %13 = arith.maximumf %11, %12 : vector<8x64xf32>
    %14 = arith.subf %9, %13 : vector<8x64xf32>
    %15 = math.absf %14 : vector<8x64xf32>
    %c0_10 = arith.constant 0 : index
    %c0_11 = arith.constant 0 : index
    %16 = vector.load %arg5[%c0_10, %c0_11] : memref<1x64xf32, #tpu.memory_space<vmem>>, vector<1x64xf32>
    %cst_12 = arith.constant dense<0.000000e+00> : vector<1x8xf32>
    %17 = tpu.matmul %16, %15, %cst_12 {dimension_numbers = #tpu.dot_dimension_numbers<[1], [1], [0], [0], [0, 0, 1, 0], [], []>} : vector<1x64xf32>, vector<8x64xf32>, vector<1x8xf32> -> vector<1x8xf32>
    %c0_13 = arith.constant 0 : index
    %c0_14 = arith.constant 0 : index
    %18 = vector.load %arg6[%c0_13, %c0_14] : memref<1x1xf32, #tpu.memory_space<vmem>>, vector<1x1xf32>
    %19 = vector.broadcast %18 : vector<1x1xf32> to vector<1x8xf32>
    %20 = arith.addf %17, %19 : vector<1x8xf32>
    %c0_15 = arith.constant 0 : index
    %c0_16 = arith.constant 0 : index
    %21 = vector.load %arg7[%c0_15, %c0_16] : memref<1x8xf32, #tpu.memory_space<vmem>>, vector<1x8xf32>
    tpu.vector_store %arg7[%c0_15, %c0_16], %20 {strides = array<i32>} : memref<1x8xf32, #tpu.memory_space<vmem>>, vector<1x8xf32>,
    return
  }
  func.func @transform_0(%arg0: i32) -> (i32, i32) {
    %c0_i32 = arith.constant 0 : i32
    %c0_i32_0 = arith.constant 0 : i32
    return %arg0, %c0_i32 : i32, i32
  }
  func.func @transform_1(%arg0: i32) -> (i32, i32) {
    %c0_i32 = arith.constant 0 : i32
    %c0_i32_0 = arith.constant 0 : i32
    return %arg0, %c0_i32 : i32, i32
  }
  func.func @transform_2(%arg0: i32) -> (i32, i32) {
    %c0_i32 = arith.constant 0 : i32
    %c0_i32_0 = arith.constant 0 : i32
    %c0_i32_1 = arith.constant 0 : i32
    return %c0_i32, %c0_i32_0 : i32, i32
  }
  func.func @transform_3(%arg0: i32) -> (i32, i32) {
    %c0_i32 = arith.constant 0 : i32
    %c0_i32_0 = arith.constant 0 : i32
    %c0_i32_1 = arith.constant 0 : i32
    return %c0_i32, %c0_i32_0 : i32, i32
  }
  func.func @transform_4(%arg0: i32) -> (i32, i32) {
    %c0_i32 = arith.constant 0 : i32
    %c0_i32_0 = arith.constant 0 : i32
    %c0_i32_1 = arith.constant 0 : i32
    return %c0_i32, %c0_i32_0 : i32, i32
  }
  func.func @transform_5(%arg0: i32) -> (i32, i32) {
    %c0_i32 = arith.constant 0 : i32
    %c0_i32_0 = arith.constant 0 : i32
    %c0_i32_1 = arith.constant 0 : i32
    return %c0_i32, %c0_i32_0 : i32, i32
  }
  func.func @transform_6(%arg0: i32) -> (i32, i32) {
    %c0_i32 = arith.constant 0 : i32
    %c0_i32_0 = arith.constant 0 : i32
    return %c0_i32, %arg0 : i32, i32
  }
}

</mosaic_0001>

<llo_original>
// kernel: siamese_forward.1
$region0: #{siamese_forward.1}
  #allocation0 [shape = 'u32[]', space=smem, size = 0x4, offset = 0x4, fixed_abs, tag = 'smem constant byte address 0x4 - core index']
  #allocation1 [shape = 'u32[144,128]{1,0:T(1,128)}', space=vmem, size = 0x12000, scoped, tag = 'internal scratch']
  #allocation2 [shape = 'f32[1,1]{1,0:T(1,128)S(1)}', space=vmem, size = 0x200, scoped, tag = 'scoped memory for siamese_forward.1']
  %s0 = inlined_call_operand.vmem [shape: f32[8,128], index: 0, kind: input, shape index: {}]
  %s1 = inlined_call_operand.vmem [shape: f32[8,128], index: 1, kind: input, shape index: {}]
  %s2 = inlined_call_operand.vmem [shape: f32[128,64], index: 2, kind: input, shape index: {}]
  %s3 = inlined_call_operand.vmem [shape: f32[1,64], index: 3, kind: input, shape index: {}]
  %s4 = inlined_call_operand.vmem [shape: f32[1,64], index: 4, kind: input, shape index: {}]
  %s5 = inlined_call_operand.<no memory space> [shape: f32[1,1], index: 5, kind: input, shape index: {}]
  %s6 = inlined_call_operand.hbm [shape: f32[1,8], index: 6, kind: output, shape index: {}]
  %s7 = sld [smem:[#allocation0]]
  $region34: #{siamese_forward.1} parent=0
    _
  %s9 = ssub.s32 1, %s7
  %s10 = scalar_select 0, %s9, %s7
  %v11 = vstv %s5
  %12 = vst [vmem:[#allocation2] sm:$0x1] %v11
  $region1: #{siamese_forward.1} parent=0
    #allocation3 [shape = 'u8[512]{0}', space=vmem, size = 0x400, scoped, tag = 'output window, operand 0, single buffered']
    #allocation4 [shape = 's32[1]{0}', space=sflag, size = 0x4, scoped, tag = 'scoped memory for siamese_forward.1']
    %13 = vsyncpa [#allocation4], 0
    // Predicated region
    $region2: #{siamese_forward.1} parent=1 // pred_check
      _
    $region3: #{siamese_forward.1} parent=1 // pred_check_branch
      %15 = sbr.rel (0) target = $region5
    $region4: #{siamese_forward.1} parent=1 // pred_region
      _
    $region5: #{siamese_forward.1} parent=1 // pred_fallthru
      _
    // Predicated region
    $region6: #{siamese_forward.1} parent=1 // pred_check
      _
    $region7: #{siamese_forward.1} parent=1 // pred_check_branch
      %17 = sbr.rel (0) target = $region9
    $region8: #{siamese_forward.1} parent=1 // pred_region
      _
    $region9: #{siamese_forward.1} parent=1 // pred_fallthru
      _
    // Predicated region
    $region10: #{siamese_forward.1} parent=1 // pred_check
      _
    $region11: #{siamese_forward.1} parent=1 // pred_check_branch
      %19 = sbr.rel (0) target = $region13
    $region12: #{siamese_forward.1} parent=1 // pred_region
      _
    $region13: #{siamese_forward.1} parent=1 // pred_fallthru
      _
    // Predicated region
    $region14: #{siamese_forward.1} parent=1 // pred_check
      _
    $region15: #{siamese_forward.1} parent=1 // pred_check_branch
      %21 = sbr.rel (0) target = $region17
    $region16: #{siamese_forward.1} parent=1 // pred_region
      _
    $region17: #{siamese_forward.1} parent=1 // pred_fallthru
      _
    // Predicated region
    $region18: #{siamese_forward.1} parent=1 // pred_check
      _
    $region19: #{siamese_forward.1} parent=1 // pred_check_branch
      %23 = sbr.rel (0) target = $region21
    $region20: #{siamese_forward.1} parent=1 // pred_region
      _
    $region21: #{siamese_forward.1} parent=1 // pred_fallthru
      _
    // Predicated region
    $region22: #{siamese_forward.1} parent=1 // pred_check
      _
    $region23: #{siamese_forward.1} parent=1 // pred_check_branch
      %25 = sbr.rel (0) target = $region25
    $region24: #{siamese_forward.1} parent=1 // pred_region
      _
    $region25: #{siamese_forward.1} parent=1 // pred_fallthru
      _
    %v26 = vld [vmem:[%s2] sm:$0xff]
    %v27 = vld [vmem:[%s2 + $0x8] sm:$0xff]
    %v28 = vld [vmem:[%s2 + $0x10] sm:$0xff]
    %v29 = vld [vmem:[%s2 + $0x18] sm:$0xff]
    %v30 = vld [vmem:[%s2 + $0x20] sm:$0xff]
    %v31 = vld [vmem:[%s2 + $0x28] sm:$0xff]
    %v32 = vld [vmem:[%s2 + $0x30] sm:$0xff]
    %v33 = vld [vmem:[%s2 + $0x38] sm:$0xff]
    %v34 = vld [vmem:[%s2 + $0x40] sm:$0xff]
    %v35 = vld [vmem:[%s2 + $0x48] sm:$0xff]
    %v36 = vld [vmem:[%s2 + $0x50] sm:$0xff]
    %v37 = vld [vmem:[%s2 + $0x58] sm:$0xff]
    %v38 = vld [vmem:[%s2 + $0x60] sm:$0xff]
    %v39 = vld [vmem:[%s2 + $0x68] sm:$0xff]
    %v40 = vld [vmem:[%s2 + $0x70] sm:$0xff]
    %v41 = vld [vmem:[%s2 + $0x78] sm:$0xff]
    %v42 = vld [vmem:[%s3] sm:$0x1]
    %v43 = vld [vmem:[%s0] sm:$0xff]
    %v44 = vld [vmem:[%s1] sm:$0xff]
    %v46 = vlaneseq
    %v47 = vshrl.u32 %v46, 7
    %v48 = vsub.s32 0, %v47
    %v49 = vrot.slane %v42, %v48
    %51 = vmatprep.subr.mxu0 0.0
    %52 = vmatpush1.msra.mxu0 %v26
    %53 = vmatprep.subr.mxu0 0.0
    %54 = vmatpush1.msra.mxu0 %v27
    %55 = vmatprep.subr.mxu0 0.0
    %56 = vmatpush1.msra.mxu0 %v28
    %57 = vmatprep.subr.mxu0 0.0
    %58 = vmatpush1.msra.mxu0 %v29
    %59 = vmatprep.subr.mxu0 0.0
    %60 = vmatpush1.msra.mxu0 %v30
    %61 = vmatprep.subr.mxu0 0.0
    %62 = vmatpush1.msra.mxu0 %v31
    %63 = vmatprep.subr.mxu0 0.0
    %64 = vmatpush1.msra.mxu0 %v32
    %65 = vmatprep.subr.mxu0 0.0
    %66 = vmatpush1.msra.mxu0 %v33
    %67 = vmatprep.subr.mxu0 0.0
    %68 = vmatpush1.msra.mxu0 %v34
    %69 = vmatprep.subr.mxu0 0.0
    %70 = vmatpush1.msra.mxu0 %v35
    %71 = vmatprep.subr.mxu0 0.0
    %72 = vmatpush1.msra.mxu0 %v36
    %73 = vmatprep.subr.mxu0 0.0
    %74 = vmatpush1.msra.mxu0 %v37
    %75 = vmatprep.subr.mxu0 0.0
    %76 = vmatpush1.msra.mxu0 %v38
    %77 = vmatprep.subr.mxu0 0.0
    %78 = vmatpush1.msra.mxu0 %v39
    %79 = vmatprep.subr.mxu0 0.0
    %80 = vmatpush1.msra.mxu0 %v40
    %81 = vmatprep.subr.mxu0 0.0
    %82 = vmatpush1.msra.mxu0 %v41
    %83 = vmatprep.subr.mxu0 0.0
    %84 = vmatpush1.msra.mxu0 0.0
    %85 = vmatprep.subr.mxu0 0.0
    %86 = vmatpush1.msra.mxu0 0.0
    %87 = vmatprep.subr.mxu0 0.0
    %88 = vmatpush1.msra.mxu0 0.0
    %89 = vmatprep.subr.mxu0 0.0
    %90 = vmatpush1.msra.mxu0 0.0
    %91 = vmatprep.subr.mxu0 0.0
    %92 = vmatpush1.msra.mxu0 0.0
    %93 = vmatprep.subr.mxu0 0.0
    %94 = vmatpush1.msra.mxu0 0.0
    %95 = vmatprep.subr.mxu0 0.0
    %96 = vmatpush1.msra.mxu0 0.0
    %97 = vmatprep.subr.mxu0 0.0
    %98 = vmatpush1.msra.mxu0 0.0
    %99 = vmatprep.subr.mxu0 0.0
    %100 = vmatpush1.msra.mxu0 0.0
    %101 = vmatprep.subr.mxu0 0.0
    %102 = vmatpush1.msra.mxu0 0.0
    %103 = vmatprep.subr.mxu0 0.0
    %104 = vmatpush1.msra.mxu0 0.0
    %105 = vmatprep.subr.mxu0 0.0
    %106 = vmatpush1.msra.mxu0 0.0
    %107 = vmatprep.subr.mxu0 0.0
    %108 = vmatpush1.msra.mxu0 0.0
    %109 = vmatprep.subr.mxu0 0.0
    %110 = vmatpush1.msra.mxu0 0.0
    %111 = vmatprep.subr.mxu0 0.0
    %112 = vmatpush1.msra.mxu0 0.0
    %113 = vmatprep.subr.mxu0 0.0
    %114 = vmatpush1.msra.mxu0 0.0
    %115 = vmatprep.mubr.f32.mxu0 0.0
    %116 = vmatmul.mubr.f32.gmra.mrb[0].mxu0 %v43
    %v117 = vpop.f32.mrb[0].mxu0
    %v118 = vadd.f32 %v49, %v117
    %v119 = vpop.f32.mrb[0].mxu0
    %120 = vdwg.mxu0
    %v121 = vmax.f32 %v118, 0.0
    %122 = vmatprep.subr.mxu0 0.0
    %123 = vmatpush1.msra.mxu0 %v26
    %124 = vmatprep.subr.mxu0 0.0
    %125 = vmatpush1.msra.mxu0 %v27
    %126 = vmatprep.subr.mxu0 0.0
    %127 = vmatpush1.msra.mxu0 %v28
    %128 = vmatprep.subr.mxu0 0.0
    %129 = vmatpush1.msra.mxu0 %v29
    %130 = vmatprep.subr.mxu0 0.0
    %131 = vmatpush1.msra.mxu0 %v30
    %132 = vmatprep.subr.mxu0 0.0
    %133 = vmatpush1.msra.mxu0 %v31
    %134 = vmatprep.subr.mxu0 0.0
    %135 = vmatpush1.msra.mxu0 %v32
    %136 = vmatprep.subr.mxu0 0.0
    %137 = vmatpush1.msra.mxu0 %v33
    %138 = vmatprep.subr.mxu0 0.0
    %139 = vmatpush1.msra.mxu0 %v34
    %140 = vmatprep.subr.mxu0 0.0
    %141 = vmatpush1.msra.mxu0 %v35
    %142 = vmatprep.subr.mxu0 0.0
    %143 = vmatpush1.msra.mxu0 %v36
    %144 = vmatprep.subr.mxu0 0.0
    %145 = vmatpush1.msra.mxu0 %v37
    %146 = vmatprep.subr.mxu0 0.0
    %147 = vmatpush1.msra.mxu0 %v38
    %148 = vmatprep.subr.mxu0 0.0
    %149 = vmatpush1.msra.mxu0 %v39
    %150 = vmatprep.subr.mxu0 0.0
    %151 = vmatpush1.msra.mxu0 %v40
    %152 = vmatprep.subr.mxu0 0.0
    %153 = vmatpush1.msra.mxu0 %v41
    %154 = vmatprep.subr.mxu0 0.0
    %155 = vmatpush1.msra.mxu0 0.0
    %156 = vmatprep.subr.mxu0 0.0
    %157 = vmatpush1.msra.mxu0 0.0
    %158 = vmatprep.subr.mxu0 0.0
    %159 = vmatpush1.msra.mxu0 0.0
    %160 = vmatprep.subr.mxu0 0.0
    %161 = vmatpush1.msra.mxu0 0.0
    %162 = vmatprep.subr.mxu0 0.0
    %163 = vmatpush1.msra.mxu0 0.0
    %164 = vmatprep.subr.mxu0 0.0
    %165 = vmatpush1.msra.mxu0 0.0
    %166 = vmatprep.subr.mxu0 0.0
    %167 = vmatpush1.msra.mxu0 0.0
    %168 = vmatprep.subr.mxu0 0.0
    %169 = vmatpush1.msra.mxu0 0.0
    %170 = vmatprep.subr.mxu0 0.0
    %171 = vmatpush1.msra.mxu0 0.0
    %172 = vmatprep.subr.mxu0 0.0
    %173 = vmatpush1.msra.mxu0 0.0
    %174 = vmatprep.subr.mxu0 0.0
    %175 = vmatpush1.msra.mxu0 0.0
    %176 = vmatprep.subr.mxu0 0.0
    %177 = vmatpush1.msra.mxu0 0.0
    %178 = vmatprep.subr.mxu0 0.0
    %179 = vmatpush1.msra.mxu0 0.0
    %180 = vmatprep.subr.mxu0 0.0
    %181 = vmatpush1.msra.mxu0 0.0
    %182 = vmatprep.subr.mxu0 0.0
    %183 = vmatpush1.msra.mxu0 0.0
    %184 = vmatprep.subr.mxu0 0.0
    %185 = vmatpush1.msra.mxu0 0.0
    %186 = vmatprep.mubr.f32.mxu0 0.0
    %187 = vmatmul.mubr.f32.gmra.mrb[0].mxu0 %v44
    %v188 = vpop.f32.mrb[0].mxu0
    %v189 = vadd.f32 %v49, %v188
    %v190 = vpop.f32.mrb[0].mxu0
    %191 = vdwg.mxu0
    %v192 = vmax.f32 %v189, 0.0
    %v193 = vsub.f32 %v121, %v192
    %v194 = vand.u32 2147483647, %v193
    %v195 = vld [vmem:[%s4] sm:$0x1]
    %v196 = vld [vmem:[#allocation2] sm:$0x1]
    %198 = vset.pattern.permute.xlu0 0
    %199 = vperm.xlu0 %198, %v196
    %v200 = vpop.permute.xlu0 %199
    %v202 = vlaneseq
    %v203 = vshrl.u32 %v202, 7
    %v204 = vsub.s32 0, %v203
    %v205 = vrot.slane %v200, %v204
    %vm206 = vcmask 523264
    %v208 = vsel %vm206, %v195, 0
    %v211 = vsel %vm206, %v194, 0
    %213 = vmatprep.subr.mxu0 0.0
    %214 = vmatpush1.xpose.msra.mxu0 %v211
    %215 = vmatprep.subr.mxu0 0.0
    %216 = vmatpush1.xpose.msra.mxu0 0.0
    %217 = vmatprep.subr.mxu0 0.0
    %218 = vmatpush1.xpose.msra.mxu0 0.0
    %219 = vmatprep.subr.mxu0 0.0
    %220 = vmatpush1.xpose.msra.mxu0 0.0
    %221 = vmatprep.subr.mxu0 0.0
    %222 = vmatpush1.xpose.msra.mxu0 0.0
    %223 = vmatprep.subr.mxu0 0.0
    %224 = vmatpush1.xpose.msra.mxu0 0.0
    %225 = vmatprep.subr.mxu0 0.0
    %226 = vmatpush1.xpose.msra.mxu0 0.0
    %227 = vmatprep.subr.mxu0 0.0
    %228 = vmatpush1.xpose.msra.mxu0 0.0
    %229 = vmatprep.subr.mxu0 0.0
    %230 = vmatpush1.xpose.msra.mxu0 0.0
    %231 = vmatprep.subr.mxu0 0.0
    %232 = vmatpush1.xpose.msra.mxu0 0.0
    %233 = vmatprep.subr.mxu0 0.0
    %234 = vmatpush1.xpose.msra.mxu0 0.0
    %235 = vmatprep.subr.mxu0 0.0
    %236 = vmatpush1.xpose.msra.mxu0 0.0
    %237 = vmatprep.subr.mxu0 0.0
    %238 = vmatpush1.xpose.msra.mxu0 0.0
    %239 = vmatprep.subr.mxu0 0.0
    %240 = vmatpush1.xpose.msra.mxu0 0.0
    %241 = vmatprep.subr.mxu0 0.0
    %242 = vmatpush1.xpose.msra.mxu0 0.0
    %243 = vmatprep.subr.mxu0 0.0
    %244 = vmatpush1.xpose.msra.mxu0 0.0
    %245 = vmatprep.subr.mxu0 0.0
    %246 = vmatpush1.xpose.msra.mxu0 0.0
    %247 = vmatprep.subr.mxu0 0.0
    %248 = vmatpush1.xpose.msra.mxu0 0.0
    %249 = vmatprep.subr.mxu0 0.0
    %250 = vmatpush1.xpose.msra.mxu0 0.0
    %251 = vmatprep.subr.mxu0 0.0
    %252 = vmatpush1.xpose.msra.mxu0 0.0
    %253 = vmatprep.subr.mxu0 0.0
    %254 = vmatpush1.xpose.msra.mxu0 0.0
    %255 = vmatprep.subr.mxu0 0.0
    %256 = vmatpush1.xpose.msra.mxu0 0.0
    %257 = vmatprep.subr.mxu0 0.0
    %258 = vmatpush1.xpose.msra.mxu0 0.0
    %259 = vmatprep.subr.mxu0 0.0
    %260 = vmatpush1.xpose.msra.mxu0 0.0
    %261 = vmatprep.subr.mxu0 0.0
    %262 = vmatpush1.xpose.msra.mxu0 0.0
    %263 = vmatprep.subr.mxu0 0.0
    %264 = vmatpush1.xpose.msra.mxu0 0.0
    %265 = vmatprep.subr.mxu0 0.0
    %266 = vmatpush1.xpose.msra.mxu0 0.0
    %267 = vmatprep.subr.mxu0 0.0
    %268 = vmatpush1.xpose.msra.mxu0 0.0
    %269 = vmatprep.subr.mxu0 0.0
    %270 = vmatpush1.xpose.msra.mxu0 0.0
    %271 = vmatprep.subr.mxu0 0.0
    %272 = vmatpush1.xpose.msra.mxu0 0.0
    %273 = vmatprep.subr.mxu0 0.0
    %274 = vmatpush1.xpose.msra.mxu0 0.0
    %275 = vmatprep.subr.mxu0 0.0
    %276 = vmatpush1.xpose.msra.mxu0 0.0
    %277 = vmatprep.mubr.f32.mxu0 0.0
    %278 = vmatmul.mubr.f32.gmra.mrb[0].mxu0 %v208
    %v279 = vpop.f32.mrb[0].mxu0
    %v280 = vadd.f32 %v205, %v279
    %v281 = vpop.f32.mrb[0].mxu0
    %282 = vdwg.mxu0
    %vm283 = vcmask 57344
    %284 = vst.msk [vmem:[#allocation3] sm:$0x1] %vm283, %v280
    // Predicated region
    $region26: #{siamese_forward.1} parent=1 // pred_check
      _
    $region27: #{siamese_forward.1} parent=1 // pred_check_branch
      %286 = sbr.rel (0) target = $region29
    $region28: #{siamese_forward.1} parent=1 // pred_region
      %s288 = ssub.s32 16, 16
      %289 = vsyncadd [#allocation4], %s288
      %s291 = sshll.u32 [#allocation3], 4
      %s292 = int_to_ptr.vmem [resolvable:$true] %s291
      %294 = dma.vmem_to_hbm [thread:$0]  %s292, 16, %s6, [#allocation4]
    $region29: #{siamese_forward.1} parent=1 // pred_fallthru
      _
    // Predicated region
    $region30: #{siamese_forward.1} parent=1 // pred_check
      _
    $region31: #{siamese_forward.1} parent=1 // pred_check_branch
      %296 = sbr.rel (0) target = $region33
    $region32: #{siamese_forward.1} parent=1 // pred_region
      %297 = dma.done [#allocation4], 16
    $region33: #{siamese_forward.1} parent=1 // pred_fallthru
      _
    %298 = vsyncpa [#allocation4], 1

</llo_original>
